<compile_context>
chip_gen: v6e
topology: v6e:2x2x1
jax: 0.10.0
libtpu: 0.0.40
codegen_flags: <defaults>
</compile_context>

<pallas_src>
import jax
import jax.numpy as jnp
import numpy as np
from jax.experimental import pallas as pl
from jax.experimental.pallas import tpu as pltpu


def _round_up(x, m):
    return ((x + m - 1) // m) * m


def _num_tensorcores():
    """Best-effort TensorCore count of the local chip (v7x has 2; v5e/v6e have 1)."""
    try:
        kind = jax.devices()[0].device_kind.lower()
    except Exception:
        return 1
    return 2 if "v7" in kind else 1


def _make_mlp_kernel(hchunk, n_chunks):
    def mlp_kernel(x_ref, w12_ref, b12_ref, wout_ref, bout_ref, o_ref):
        # x_ref:    (R, T*C)     bf16 lane-dense input tile (R nodes)
        # w12_ref:  (T*C, T*H)   bf16 block-diagonal folded linear1·linear2
        # b12_ref:  (1, T*H)     f32
        # wout_ref: (T*H, O_pad) bf16 folded linear3·out_ln, zero-padded lane-dense
        # bout_ref: (1, O_pad)   f32
        # o_ref:    (R, O_pad)   f32
        x = x_ref[...]
        acc = jnp.broadcast_to(bout_ref[...], o_ref.shape)  # f32 accumulator (starts at bias)
        for c in range(n_chunks):
            lo = c * hchunk
            h = jnp.dot(x, w12_ref[:, lo:lo + hchunk],
                        preferred_element_type=jnp.float32)
            h = jnp.maximum(h + b12_ref[:, lo:lo + hchunk], 0.0)
            acc = acc + jnp.dot(h.astype(wout_ref.dtype),
                                wout_ref[lo:lo + hchunk, :],
                                preferred_element_type=jnp.float32)
        o_ref[...] = acc.astype(o_ref.dtype)
    return mlp_kernel


def fold_mlp_params(params, *, in_time_len, out_time_len, storage_dtype=jnp.bfloat16):
    """One-time algebraic fold of the 4 Linears into 2 matmuls (exact in f32).

    Input-independent, so it is hoisted out of the per-call path: doing it per forward
    call re-runs ~6 small serial XLA ops before every kernel launch.
    """
    w1, b1, w2, b2, w3, b3, wo, bo = params
    C, H = w1.shape
    T = int(in_time_len)
    O = int(wo.shape[-1])

    # linear1 · linear2 (no nonlinearity between them in the PyTorch Sequential).
    w12 = w1 @ w2                                   # (C, H)
    b12 = b1 @ w2 + b2                              # (H,)
    # linear3 folded into out_ln:
    #   sum_t (h2r_t @ w3 + b3) @ wo_t = sum_t h2r_t @ (w3 @ wo_t) + b3 @ sum_t wo_t + bo
    wo3 = wo.reshape(T, H, O)                       # row t*H + h of wo (h fastest = h.view order)
    wout = jnp.einsum('hk,tko->tho', w3, wo3).reshape(T * H, O)    # (T*H, O)
    bout = bo + b3 @ wo3.sum(axis=0)                               # (O,)

    # Block-diagonal first layer keeps activations lane-dense: one (R, T*C) @ (T*C, T*H)
    # matmul instead of per-timestep (R*T, C) work and in-kernel reshapes.
    w12_bd = jnp.kron(jnp.eye(T, dtype=w12.dtype), w12)            # (T*C, T*H)
    b12_rep = jnp.tile(b12, T).reshape(1, T * H)                   # (1, T*H)

    # Lane-dense, zero-padded output (avoids masked partial stores on O=36).
    O_pad = _round_up(O, 128)
    wout_p = jnp.pad(wout, ((0, 0), (0, O_pad - O)))
    bout_p = jnp.pad(bout, (0, O_pad - O)).reshape(1, O_pad)

    return dict(
        # bf16 storage halves HBM traffic and runs the MXU natively; biases and the
        # accumulation stay f32 inside the kernel.
        w12_bd=w12_bd.astype(storage_dtype),
        b12=b12_rep.astype(jnp.float32),
        wout=wout_p.astype(storage_dtype),
        bout=bout_p.astype(jnp.float32),
        T=T, C=int(C), H=int(H), O=O, O_pad=int(O_pad),
        out_time_len=int(out_time_len),
    )


def mlp_forward(x, folded, *, node_tile=4096):
    """x: (B, N, T, C_in) float32 -> (B, N, out_time_len, out_channels) float32."""
    B, N, T, C = x.shape
    assert T == folded["T"] and C == folded["C"]
    TH = folded["T"] * folded["H"]
    O, O_pad = folded["O"], folded["O_pad"]
    M = B * N

    # ---- Generation-aware node tiling -----------------------------------------
    # The grid is a serial loop on single-TensorCore chips (v5e/v6e): use one maximal
    # tile there (extra steps only add ~0.35 us each).  On multi-TC chips (v7x) keep an
    # even number of roughly equal steps so both cores get balanced work.
    num_tc = _num_tensorcores()
    M_round = _round_up(M, 8)
    node_tile = max(8, min(_round_up(node_tile, 8), M_round))
    if num_tc > 1:
        steps = max(num_tc, -(-M_round // node_tile))
        steps = _round_up(steps, num_tc)
        node_tile = max(8, _round_up(-(-M_round // steps), 8))
    M_pad = _round_up(M, node_tile)

    storage_dtype = folded["w12_bd"].dtype
    x_flat = x.reshape(M, T * C).astype(storage_dtype)
    if M_pad > M:
        # Row padding (extra input copy) only when node_tile does not divide M.
        x_flat = jnp.pad(x_flat, ((0, M_pad - M), (0, 0)))

    # Hidden-dim chunking: live intermediate is (node_tile, hchunk) instead of
    # (node_tile, T*H); bias+ReLU fuse into consumption of each MXU result chunk.
    hchunk = 128 if TH % 128 == 0 else TH
    n_chunks = TH // hchunk

    # VMEM budget (double-buffered ins/outs + live intermediates), with headroom.
    bpe = jnp.dtype(storage_dtype).itemsize
    est = (2 * node_tile * T * C * bpe              # x tile (double-buffered)
           + 2 * node_tile * O_pad * 4              # out tile (double-buffered)
           + 2 * (T * C * TH + TH * O_pad) * bpe    # resident weights
           + 2 * (TH + O_pad) * 4                   # biases
           + 2 * node_tile * hchunk * 4             # live hidden chunk
           + node_tile * O_pad * 4)                 # f32 accumulator
    vmem_limit = int(min(max(2 * est + (4 << 20), 32 << 20), 64 << 20))

    grid = (M_pad // node_tile,)
    out = pl.pallas_call(
        _make_mlp_kernel(hchunk, n_chunks),
        out_shape=jax.ShapeDtypeStruct((M_pad, O_pad), jnp.float32),
        grid_spec=pltpu.PrefetchScalarGridSpec(
            num_scalar_prefetch=0,
            grid=grid,
            in_specs=[
                pl.BlockSpec((node_tile, T * C), lambda i: (i, 0)),
                pl.BlockSpec((T * C, TH), lambda i: (0, 0)),
                pl.BlockSpec((1, TH), lambda i: (0, 0)),
                pl.BlockSpec((TH, O_pad), lambda i: (0, 0)),
                pl.BlockSpec((1, O_pad), lambda i: (0, 0)),
            ],
            out_specs=pl.BlockSpec((node_tile, O_pad), lambda i: (i, 0)),
        ),
        compiler_params=pltpu.CompilerParams(
            dimension_semantics=("parallel",),
            vmem_limit_bytes=vmem_limit),
    )(x_flat, folded["w12_bd"], folded["b12"], folded["wout"], folded["bout"])

    # TODO(synk): production consumers could read the padded (M_pad, O_pad) layout
    # directly and skip this slice/reshape copy (saves output-side HBM traffic).
    C_out = O // folded["out_time_len"]
    return out[:M, :O].reshape(B, N, folded["out_time_len"], C_out)


def mlp_reference(x, params, *, out_time_len):
    """Pure-jnp reference matching the PyTorch module exactly (f32)."""
    w1, b1, w2, b2, w3, b3, wo, bo = params
    B, N = x.shape[0], x.shape[1]
    h = x @ w1 + b1
    h = h @ w2 + b2
    h = jnp.maximum(h, 0.0)           # ReLU sits between linear2 and linear3
    h = h @ w3 + b3
    h = h.reshape(B, N, -1)           # (T, H) flatten, H fastest — matches h.view
    out = h @ wo + bo
    return out.reshape(B, N, out_time_len, -1)


if __name__ == "__main__":
    # Small shapes consistent with the module defaults.
    in_channels, hidden, T_in, T_out, C_out = 6, 64, 12, 12, 3
    B, N = 2, 8   # batch, num_nodes

    key = jax.random.PRNGKey(0)
    ks = jax.random.split(key, 9)

    def init(k, shape, scale):
        return jax.random.normal(k, shape, jnp.float32) * scale

    # Weights stored in (in, out) layout, i.e. the transpose of PyTorch's nn.Linear weight.
    w1 = init(ks[0], (in_channels, hidden), 0.2)
    b1 = init(ks[1], (hidden,), 0.1)
    w2 = init(ks[2], (hidden, hidden), 0.1)
    b2 = init(ks[3], (hidden,), 0.1)
    w3 = init(ks[4], (hidden, hidden), 0.1)
    b3 = init(ks[5], (hidden,), 0.1)
    wo = init(ks[6], (hidden * T_in, T_out * C_out), 0.05)
    bo = init(ks[7], (T_out * C_out,), 0.1)
    x = init(ks[8], (B, N, T_in, in_channels), 1.0)
    params = (w1, b1, w2, b2, w3, b3, wo, bo)

    # Fold once (input-independent), then run the kernel.
    folded = fold_mlp_params(params, in_time_len=T_in, out_time_len=T_out)
    out = mlp_forward(x, folded)
    out = jax.block_until_ready(out)

    ref = mlp_reference(x, params, out_time_len=T_out)
    assert out.shape == (B, N, T_out, C_out)
    # bf16 storage with f32 accumulation vs f32 reference: loosened tolerance.
    np.testing.assert_allclose(np.asarray(out), np.asarray(ref), rtol=2e-2, atol=2e-2)
    print("KERNEL_OK")
</pallas_src>

<mosaic_0001>
module attributes {stable_mosaic.version = 11 : i64} {
  func.func @mlp_kernel(%arg0: i32, %arg1: memref<16x72xbf16, #tpu.memory_space<vmem>>, %arg2: memref<72x768xbf16, #tpu.memory_space<vmem>>, %arg3: memref<1x768xf32, #tpu.memory_space<vmem>>, %arg4: memref<768x128xbf16, #tpu.memory_space<vmem>>, %arg5: memref<1x128xf32, #tpu.memory_space<vmem>>, %arg6: memref<16x128xf32, #tpu.memory_space<vmem>>) attributes {dimension_semantics = [#tpu.dimension_semantics<parallel>], iteration_bounds = array<i64: 1>, scalar_prefetch = 0 : i64, scratch_operands = 0 : i64, tpu.core_type = #tpu.core_type<tc>, window_params = [{transform_indices = @transform_0, window_bounds = array<i64: 16, 72>}, {pipeline_mode = #tpu.pipeline_mode<synchronous>, transform_indices = @transform_1, window_bounds = array<i64: 72, 768>}, {pipeline_mode = #tpu.pipeline_mode<synchronous>, transform_indices = @transform_2, window_bounds = array<i64: 1, 768>}, {pipeline_mode = #tpu.pipeline_mode<synchronous>, transform_indices = @transform_3, window_bounds = array<i64: 768, 128>}, {pipeline_mode = #tpu.pipeline_mode<synchronous>, transform_indices = @transform_4, window_bounds = array<i64: 1, 128>}, {transform_indices = @transform_5, window_bounds = array<i64: 16, 128>}]} {
    %c0 = arith.constant 0 : index
    %c0_0 = arith.constant 0 : index
    %0 = vector.load %arg1[%c0, %c0_0] : memref<16x72xbf16, #tpu.memory_space<vmem>>, vector<16x72xbf16>
    %c0_1 = arith.constant 0 : index
    %c0_2 = arith.constant 0 : index
    %1 = vector.load %arg5[%c0_1, %c0_2] : memref<1x128xf32, #tpu.memory_space<vmem>>, vector<1x128xf32>
    %2 = vector.shape_cast %1 : vector<1x128xf32> to vector<1x128xf32>
    %3 = vector.broadcast %2 : vector<1x128xf32> to vector<16x128xf32>
    %c0_3 = arith.constant 0 : index
    %c0_4 = arith.constant 0 : index
    %4 = vector.load %arg2[%c0_3, %c0_4] : memref<72x768xbf16, #tpu.memory_space<vmem>>, vector<72x128xbf16>
    %cst = arith.constant dense<0.000000e+00> : vector<16x128xf32>
    %5 = tpu.matmul %0, %4, %cst {dimension_numbers = #tpu.dot_dimension_numbers<[1], [0], [0], [1], [0, 0, 1, 1], [], []>} : vector<16x72xbf16>, vector<72x128xbf16>, vector<16x128xf32> -> vector<16x128xf32>
    %c0_5 = arith.constant 0 : index
    %c0_6 = arith.constant 0 : index
    %6 = vector.load %arg3[%c0_5, %c0_6] : memref<1x768xf32, #tpu.memory_space<vmem>>, vector<1x128xf32>
    %7 = vector.broadcast %6 : vector<1x128xf32> to vector<16x128xf32>
    %8 = arith.addf %5, %7 : vector<16x128xf32>
    %cst_7 = arith.constant 0.000000e+00 : f32
    %9 = vector.broadcast %cst_7 : f32 to vector<16x128xf32>
    %10 = arith.maximumf %8, %9 : vector<16x128xf32>
    %11 = arith.truncf %10 : vector<16x128xf32> to vector<16x128xbf16>
    %c0_8 = arith.constant 0 : index
    %c0_9 = arith.constant 0 : index
    %12 = vector.load %arg4[%c0_8, %c0_9] : memref<768x128xbf16, #tpu.memory_space<vmem>>, vector<128x128xbf16>
    %cst_10 = arith.constant dense<0.000000e+00> : vector<16x128xf32>
    %13 = tpu.matmul %11, %12, %cst_10 {dimension_numbers = #tpu.dot_dimension_numbers<[1], [0], [0], [1], [0, 0, 1, 1], [], []>} : vector<16x128xbf16>, vector<128x128xbf16>, vector<16x128xf32> -> vector<16x128xf32>
    %14 = arith.addf %3, %13 : vector<16x128xf32>
    %c0_11 = arith.constant 0 : index
    %c128 = arith.constant 128 : index
    %15 = vector.load %arg2[%c0_11, %c128] : memref<72x768xbf16, #tpu.memory_space<vmem>>, vector<72x128xbf16>
    %cst_12 = arith.constant dense<0.000000e+00> : vector<16x128xf32>
    %16 = tpu.matmul %0, %15, %cst_12 {dimension_numbers = #tpu.dot_dimension_numbers<[1], [0], [0], [1], [0, 0, 1, 1], [], []>} : vector<16x72xbf16>, vector<72x128xbf16>, vector<16x128xf32> -> vector<16x128xf32>
    %c0_13 = arith.constant 0 : index
    %c128_14 = arith.constant 128 : index
    %17 = vector.load %arg3[%c0_13, %c128_14] : memref<1x768xf32, #tpu.memory_space<vmem>>, vector<1x128xf32>
    %18 = vector.broadcast %17 : vector<1x128xf32> to vector<16x128xf32>
    %19 = arith.addf %16, %18 : vector<16x128xf32>
    %cst_15 = arith.constant 0.000000e+00 : f32
    %20 = vector.broadcast %cst_15 : f32 to vector<16x128xf32>
    %21 = arith.maximumf %19, %20 : vector<16x128xf32>
    %22 = arith.truncf %21 : vector<16x128xf32> to vector<16x128xbf16>
    %c128_16 = arith.constant 128 : index
    %c0_17 = arith.constant 0 : index
    %23 = vector.load %arg4[%c128_16, %c0_17] : memref<768x128xbf16, #tpu.memory_space<vmem>>, vector<128x128xbf16>
    %cst_18 = arith.constant dense<0.000000e+00> : vector<16x128xf32>
    %24 = tpu.matmul %22, %23, %cst_18 {dimension_numbers = #tpu.dot_dimension_numbers<[1], [0], [0], [1], [0, 0, 1, 1], [], []>} : vector<16x128xbf16>, vector<128x128xbf16>, vector<16x128xf32> -> vector<16x128xf32>
    %25 = arith.addf %14, %24 : vector<16x128xf32>
    %c0_19 = arith.constant 0 : index
    %c256 = arith.constant 256 : index
    %26 = vector.load %arg2[%c0_19, %c256] : memref<72x768xbf16, #tpu.memory_space<vmem>>, vector<72x128xbf16>
    %cst_20 = arith.constant dense<0.000000e+00> : vector<16x128xf32>
    %27 = tpu.matmul %0, %26, %cst_20 {dimension_numbers = #tpu.dot_dimension_numbers<[1], [0], [0], [1], [0, 0, 1, 1], [], []>} : vector<16x72xbf16>, vector<72x128xbf16>, vector<16x128xf32> -> vector<16x128xf32>
    %c0_21 = arith.constant 0 : index
    %c256_22 = arith.constant 256 : index
    %28 = vector.load %arg3[%c0_21, %c256_22] : memref<1x768xf32, #tpu.memory_space<vmem>>, vector<1x128xf32>
    %29 = vector.broadcast %28 : vector<1x128xf32> to vector<16x128xf32>
    %30 = arith.addf %27, %29 : vector<16x128xf32>
    %cst_23 = arith.constant 0.000000e+00 : f32
    %31 = vector.broadcast %cst_23 : f32 to vector<16x128xf32>
    %32 = arith.maximumf %30, %31 : vector<16x128xf32>
    %33 = arith.truncf %32 : vector<16x128xf32> to vector<16x128xbf16>
    %c256_24 = arith.constant 256 : index
    %c0_25 = arith.constant 0 : index
    %34 = vector.load %arg4[%c256_24, %c0_25] : memref<768x128xbf16, #tpu.memory_space<vmem>>, vector<128x128xbf16>
    %cst_26 = arith.constant dense<0.000000e+00> : vector<16x128xf32>
    %35 = tpu.matmul %33, %34, %cst_26 {dimension_numbers = #tpu.dot_dimension_numbers<[1], [0], [0], [1], [0, 0, 1, 1], [], []>} : vector<16x128xbf16>, vector<128x128xbf16>, vector<16x128xf32> -> vector<16x128xf32>
    %36 = arith.addf %25, %35 : vector<16x128xf32>
    %c0_27 = arith.constant 0 : index
    %c384 = arith.constant 384 : index
    %37 = vector.load %arg2[%c0_27, %c384] : memref<72x768xbf16, #tpu.memory_space<vmem>>, vector<72x128xbf16>
    %cst_28 = arith.constant dense<0.000000e+00> : vector<16x128xf32>
    %38 = tpu.matmul %0, %37, %cst_28 {dimension_numbers = #tpu.dot_dimension_numbers<[1], [0], [0], [1], [0, 0, 1, 1], [], []>} : vector<16x72xbf16>, vector<72x128xbf16>, vector<16x128xf32> -> vector<16x128xf32>
    %c0_29 = arith.constant 0 : index
    %c384_30 = arith.constant 384 : index
    %39 = vector.load %arg3[%c0_29, %c384_30] : memref<1x768xf32, #tpu.memory_space<vmem>>, vector<1x128xf32>
    %40 = vector.broadcast %39 : vector<1x128xf32> to vector<16x128xf32>
    %41 = arith.addf %38, %40 : vector<16x128xf32>
    %cst_31 = arith.constant 0.000000e+00 : f32
    %42 = vector.broadcast %cst_31 : f32 to vector<16x128xf32>
    %43 = arith.maximumf %41, %42 : vector<16x128xf32>
    %44 = arith.truncf %43 : vector<16x128xf32> to vector<16x128xbf16>
    %c384_32 = arith.constant 384 : index
    %c0_33 = arith.constant 0 : index
    %45 = vector.load %arg4[%c384_32, %c0_33] : memref<768x128xbf16, #tpu.memory_space<vmem>>, vector<128x128xbf16>
    %cst_34 = arith.constant dense<0.000000e+00> : vector<16x128xf32>
    %46 = tpu.matmul %44, %45, %cst_34 {dimension_numbers = #tpu.dot_dimension_numbers<[1], [0], [0], [1], [0, 0, 1, 1], [], []>} : vector<16x128xbf16>, vector<128x128xbf16>, vector<16x128xf32> -> vector<16x128xf32>
    %47 = arith.addf %36, %46 : vector<16x128xf32>
    %c0_35 = arith.constant 0 : index
    %c512 = arith.constant 512 : index
    %48 = vector.load %arg2[%c0_35, %c512] : memref<72x768xbf16, #tpu.memory_space<vmem>>, vector<72x128xbf16>
    %cst_36 = arith.constant dense<0.000000e+00> : vector<16x128xf32>
    %49 = tpu.matmul %0, %48, %cst_36 {dimension_numbers = #tpu.dot_dimension_numbers<[1], [0], [0], [1], [0, 0, 1, 1], [], []>} : vector<16x72xbf16>, vector<72x128xbf16>, vector<16x128xf32> -> vector<16x128xf32>
    %c0_37 = arith.constant 0 : index
    %c512_38 = arith.constant 512 : index
    %50 = vector.load %arg3[%c0_37, %c512_38] : memref<1x768xf32, #tpu.memory_space<vmem>>, vector<1x128xf32>
    %51 = vector.broadcast %50 : vector<1x128xf32> to vector<16x128xf32>
    %52 = arith.addf %49, %51 : vector<16x128xf32>
    %cst_39 = arith.constant 0.000000e+00 : f32
    %53 = vector.broadcast %cst_39 : f32 to vector<16x128xf32>
    %54 = arith.maximumf %52, %53 : vector<16x128xf32>
    %55 = arith.truncf %54 : vector<16x128xf32> to vector<16x128xbf16>
    %c512_40 = arith.constant 512 : index
    %c0_41 = arith.constant 0 : index
    %56 = vector.load %arg4[%c512_40, %c0_41] : memref<768x128xbf16, #tpu.memory_space<vmem>>, vector<128x128xbf16>
    %cst_42 = arith.constant dense<0.000000e+00> : vector<16x128xf32>
    %57 = tpu.matmul %55, %56, %cst_42 {dimension_numbers = #tpu.dot_dimension_numbers<[1], [0], [0], [1], [0, 0, 1, 1], [], []>} : vector<16x128xbf16>, vector<128x128xbf16>, vector<16x128xf32> -> vector<16x128xf32>
    %58 = arith.addf %47, %57 : vector<16x128xf32>
    %c0_43 = arith.constant 0 : index
    %c640 = arith.constant 640 : index
    %59 = vector.load %arg2[%c0_43, %c640] : memref<72x768xbf16, #tpu.memory_space<vmem>>, vector<72x128xbf16>
    %cst_44 = arith.constant dense<0.000000e+00> : vector<16x128xf32>
    %60 = tpu.matmul %0, %59, %cst_44 {dimension_numbers = #tpu.dot_dimension_numbers<[1], [0], [0], [1], [0, 0, 1, 1], [], []>} : vector<16x72xbf16>, vector<72x128xbf16>, vector<16x128xf32> -> vector<16x128xf32>
    %c0_45 = arith.constant 0 : index
    %c640_46 = arith.constant 640 : index
    %61 = vector.load %arg3[%c0_45, %c640_46] : memref<1x768xf32, #tpu.memory_space<vmem>>, vector<1x128xf32>
    %62 = vector.broadcast %61 : vector<1x128xf32> to vector<16x128xf32>
    %63 = arith.addf %60, %62 : vector<16x128xf32>
    %cst_47 = arith.constant 0.000000e+00 : f32
    %64 = vector.broadcast %cst_47 : f32 to vector<16x128xf32>
    %65 = arith.maximumf %63, %64 : vector<16x128xf32>
    %66 = arith.truncf %65 : vector<16x128xf32> to vector<16x128xbf16>
    %c640_48 = arith.constant 640 : index
    %c0_49 = arith.constant 0 : index
    %67 = vector.load %arg4[%c640_48, %c0_49] : memref<768x128xbf16, #tpu.memory_space<vmem>>, vector<128x128xbf16>
    %cst_50 = arith.constant dense<0.000000e+00> : vector<16x128xf32>
    %68 = tpu.matmul %66, %67, %cst_50 {dimension_numbers = #tpu.dot_dimension_numbers<[1], [0], [0], [1], [0, 0, 1, 1], [], []>} : vector<16x128xbf16>, vector<128x128xbf16>, vector<16x128xf32> -> vector<16x128xf32>
    %69 = arith.addf %58, %68 : vector<16x128xf32>
    %c0_51 = arith.constant 0 : index
    %c0_52 = arith.constant 0 : index
    %70 = vector.load %arg6[%c0_51, %c0_52] : memref<16x128xf32, #tpu.memory_space<vmem>>, vector<16x128xf32>
    tpu.vector_store %arg6[%c0_51, %c0_52], %69 {strides = array<i32>} : memref<16x128xf32, #tpu.memory_space<vmem>>, vector<16x128xf32>,
    return
  }
  func.func @transform_0(%arg0: i32) -> (i32, i32) {
    %c0_i32 = arith.constant 0 : i32
    %c0_i32_0 = arith.constant 0 : i32
    return %arg0, %c0_i32 : i32, i32
  }
  func.func @transform_1(%arg0: i32) -> (i32, i32) {
    %c0_i32 = arith.constant 0 : i32
    %c0_i32_0 = arith.constant 0 : i32
    %c0_i32_1 = arith.constant 0 : i32
    return %c0_i32, %c0_i32_0 : i32, i32
  }
  func.func @transform_2(%arg0: i32) -> (i32, i32) {
    %c0_i32 = arith.constant 0 : i32
    %c0_i32_0 = arith.constant 0 : i32
    %c0_i32_1 = arith.constant 0 : i32
    return %c0_i32, %c0_i32_0 : i32, i32
  }
  func.func @transform_3(%arg0: i32) -> (i32, i32) {
    %c0_i32 = arith.constant 0 : i32
    %c0_i32_0 = arith.constant 0 : i32
    %c0_i32_1 = arith.constant 0 : i32
    return %c0_i32, %c0_i32_0 : i32, i32
  }
  func.func @transform_4(%arg0: i32) -> (i32, i32) {
    %c0_i32 = arith.constant 0 : i32
    %c0_i32_0 = arith.constant 0 : i32
    %c0_i32_1 = arith.constant 0 : i32
    return %c0_i32, %c0_i32_0 : i32, i32
  }
  func.func @transform_5(%arg0: i32) -> (i32, i32) {
    %c0_i32 = arith.constant 0 : i32
    %c0_i32_0 = arith.constant 0 : i32
    return %arg0, %c0_i32 : i32, i32
  }
}

</mosaic_0001>

<llo_original>
// kernel: tpu_custom_call.1
$region0: #{tpu_custom_call.1}
  #allocation0 [shape = 'u32[]', space=smem, size = 0x4, offset = 0x4, fixed_abs, tag = 'smem constant byte address 0x4 - core index']
  #allocation1 [shape = 'u32[144,128]{1,0:T(1,128)}', space=vmem, size = 0x12000, scoped, tag = 'internal scratch']
  %s0 = inlined_call_operand.hbm [shape: bf16[16,72], index: 0, kind: input, shape index: {}]
  %s1 = inlined_call_operand.hbm [shape: bf16[72,768], index: 1, kind: input, shape index: {}]
  %s2 = inlined_call_operand.hbm [shape: f32[1,768], index: 2, kind: input, shape index: {}]
  %s3 = inlined_call_operand.hbm [shape: bf16[768,128], index: 3, kind: input, shape index: {}]
  %s4 = inlined_call_operand.vmem [shape: f32[1,128], index: 4, kind: input, shape index: {}]
  %s5 = inlined_call_operand.hbm [shape: f32[16,128], index: 5, kind: output, shape index: {}]
  %s6 = sld [smem:[#allocation0]]
  $region46: #{tpu_custom_call.1} parent=0
    _
  %s8 = ssub.s32 1, %s6
  %s9 = scalar_select 0, %s8, %s6
  $region1: #{tpu_custom_call.1} parent=0
    #allocation2 [shape = 'u8[4096]{0}', space=vmem, size = 0x1000, scoped, tag = 'input window, operand 0, single buffered']
    #allocation3 [shape = 's32[1]{0}', space=sflag, size = 0x4, scoped, tag = 'scoped memory for tpu_custom_call.1']
    #allocation4 [shape = 's32[1]{0}', space=sflag, size = 0x4, scoped, tag = 'scoped memory for tpu_custom_call.1']
    #allocation5 [shape = 'u8[110592]{0}', space=vmem, size = 0x1b000, scoped, tag = 'input window, operand 1, single buffered']
    #allocation6 [shape = 's32[1]{0}', space=sflag, size = 0x4, scoped, tag = 'scoped memory for tpu_custom_call.1']
    #allocation7 [shape = 'u8[3072]{0}', space=vmem, size = 0xc00, scoped, tag = 'input window, operand 2, single buffered']
    #allocation8 [shape = 'u8[196608]{0}', space=vmem, size = 0x30000, scoped, tag = 'input window, operand 3, single buffered']
    #allocation9 [shape = 's32[1]{0}', space=sflag, size = 0x4, scoped, tag = 'scoped memory for tpu_custom_call.1']
    #allocation10 [shape = 'u8[8192]{0}', space=vmem, size = 0x2000, scoped, tag = 'output window, operand 0, single buffered']
    %10 = vsyncpa [#allocation3], 0
    %11 = vsyncpa [#allocation6], 0
    %12 = vsyncpa [#allocation9], 0
    %13 = vsyncpa [#allocation4], 0
    // Predicated region
    $region2: #{tpu_custom_call.1} parent=1 // pred_check
      _
    $region3: #{tpu_custom_call.1} parent=1 // pred_check_branch
      %15 = sbr.rel (0) target = $region5
    $region4: #{tpu_custom_call.1} parent=1 // pred_region
      %s17 = ssub.s32 128, 128
      %18 = vsyncadd [#allocation3], %s17
      %s19 = sshll.u32 [#allocation2], 4
      %s20 = int_to_ptr.vmem [resolvable:$true] %s19
      %25 = dma.hbm_to_vmem [thread:$0]  %s0, 128, %s20, [#allocation3], 64, 64, 4
    $region5: #{tpu_custom_call.1} parent=1 // pred_fallthru
      _
    // Predicated region
    $region6: #{tpu_custom_call.1} parent=1 // pred_check
      _
    $region7: #{tpu_custom_call.1} parent=1 // pred_check_branch
      %27 = sbr.rel (0) target = $region9
    $region8: #{tpu_custom_call.1} parent=1 // pred_region
      %s29 = ssub.s32 3456, 3456
      %30 = vsyncadd [#allocation6], %s29
      %s31 = sshll.u32 [#allocation5], 4
      %s32 = int_to_ptr.vmem [resolvable:$true] %s31
      %37 = dma.hbm_to_vmem [thread:$0]  %s1, 3456, %s32, [#allocation6], 384, 384, 24
    $region9: #{tpu_custom_call.1} parent=1 // pred_fallthru
      _
    // Predicated region
    $region10: #{tpu_custom_call.1} parent=1 // pred_check
      _
    $region11: #{tpu_custom_call.1} parent=1 // pred_check_branch
      %39 = sbr.rel (0) target = $region13
    $region12: #{tpu_custom_call.1} parent=1 // pred_region
      %s41 = ssub.s32 96, 96
      %42 = vsyncadd [#allocation6], %s41
      %s44 = sshll.u32 [#allocation7], 4
      %s45 = int_to_ptr.vmem [resolvable:$true] %s44
      %47 = dma.hbm_to_vmem [thread:$0]  %s2, 96, %s45, [#allocation6]
    $region13: #{tpu_custom_call.1} parent=1 // pred_fallthru
      _
    // Predicated region
    $region14: #{tpu_custom_call.1} parent=1 // pred_check
      _
    $region15: #{tpu_custom_call.1} parent=1 // pred_check_branch
      %49 = sbr.rel (0) target = $region17
    $region16: #{tpu_custom_call.1} parent=1 // pred_region
      %s51 = ssub.s32 6144, 6144
      %52 = vsyncadd [#allocation9], %s51
      %s53 = sshll.u32 [#allocation8], 4
      %s54 = int_to_ptr.vmem [resolvable:$true] %s53
      %59 = dma.hbm_to_vmem [thread:$0]  %s3, 6144, %s54, [#allocation9], 64, 64, 4
    $region17: #{tpu_custom_call.1} parent=1 // pred_fallthru
      _
    // Predicated region
    $region18: #{tpu_custom_call.1} parent=1 // pred_check
      _
    $region19: #{tpu_custom_call.1} parent=1 // pred_check_branch
      %61 = sbr.rel (0) target = $region21
    $region20: #{tpu_custom_call.1} parent=1 // pred_region
      _
    $region21: #{tpu_custom_call.1} parent=1 // pred_fallthru
      _
    // Predicated region
    $region22: #{tpu_custom_call.1} parent=1 // pred_check
      _
    $region23: #{tpu_custom_call.1} parent=1 // pred_check_branch
      %63 = sbr.rel (0) target = $region25
    $region24: #{tpu_custom_call.1} parent=1 // pred_region
      %64 = dma.done [#allocation3], 128
    $region25: #{tpu_custom_call.1} parent=1 // pred_fallthru
      _
    // Predicated region
    $region26: #{tpu_custom_call.1} parent=1 // pred_check
      _
    $region27: #{tpu_custom_call.1} parent=1 // pred_check_branch
      %66 = sbr.rel (0) target = $region29
    $region28: #{tpu_custom_call.1} parent=1 // pred_region
      %67 = dma.done [#allocation6], 3456
    $region29: #{tpu_custom_call.1} parent=1 // pred_fallthru
      _
    // Predicated region
    $region30: #{tpu_custom_call.1} parent=1 // pred_check
      _
    $region31: #{tpu_custom_call.1} parent=1 // pred_check_branch
      %69 = sbr.rel (0) target = $region33
    $region32: #{tpu_custom_call.1} parent=1 // pred_region
      %70 = dma.done [#allocation6], 96
    $region33: #{tpu_custom_call.1} parent=1 // pred_fallthru
      _
    // Predicated region
    $region34: #{tpu_custom_call.1} parent=1 // pred_check
      _
    $region35: #{tpu_custom_call.1} parent=1 // pred_check_branch
      %72 = sbr.rel (0) target = $region37
    $region36: #{tpu_custom_call.1} parent=1 // pred_region
      %73 = dma.done [#allocation9], 6144
    $region37: #{tpu_custom_call.1} parent=1 // pred_fallthru
      _
    %v75 = vld [vmem:[#allocation2] sm:$0xf]
    %v76 = vld [vmem:[#allocation2 + $0x4] sm:$0xf]
    %v77 = vld [vmem:[%s4] sm:$0x1]
    %v79 = vlaneseq
    %v80 = vshrl.u32 %v79, 7
    %v81 = vsub.s32 0, %v80
    %v82 = vrot.slane %v77, %v81
    %v84 = vld [vmem:[#allocation5] sm:$0xf]
    %v85 = vld [vmem:[#allocation5 + $0x18] sm:$0xf]
    %v86 = vld [vmem:[#allocation5 + $0x30] sm:$0xf]
    %v87 = vld [vmem:[#allocation5 + $0x48] sm:$0xf]
    %v88 = vld [vmem:[#allocation5 + $0x60] sm:$0xf]
    %v89 = vld [vmem:[#allocation5 + $0x78] sm:$0xf]
    %v90 = vld [vmem:[#allocation5 + $0x90] sm:$0xf]
    %v91 = vld [vmem:[#allocation5 + $0xa8] sm:$0xf]
    %v92 = vld [vmem:[#allocation5 + $0xc0] sm:$0xf]
    %v93 = vld [vmem:[#allocation7] sm:$0x1]
    %v95 = vlaneseq
    %v96 = vshrl.u32 %v95, 7
    %v97 = vsub.s32 0, %v96
    %v98 = vrot.slane %v93, %v97
    %v102 = vunpack.c.l.b16 %v75
    %v103 = vunpack.c.l.b16 %v76
    %v104 = vpack.c.b16 %v103, %v102
    %v114 = vunpack.c.l.b16 %v84
    %v115 = vunpack.c.l.b16 %v85
    %v116 = vunpack.c.l.b16 %v86
    %v117 = vunpack.c.l.b16 %v87
    %v118 = vunpack.c.l.b16 %v88
    %v119 = vunpack.c.l.b16 %v89
    %v120 = vunpack.c.l.b16 %v90
    %v121 = vunpack.c.l.b16 %v91
    %v122 = vunpack.c.l.b16 %v92
    %v123 = vpack.c.b16 %v115, %v114
    %v124 = vpack.c.b16 %v117, %v116
    %v125 = vpack.c.b16 %v119, %v118
    %v126 = vpack.c.b16 %v121, %v120
    %v127 = vpack.c.b16 %v122, %v122
    %vm132 = vcmask 588800
    %v134 = vsel %vm132, %v104, 0
    %vm136 = vcmask 1043456
    %v138 = vsel %vm136, %v127, 0
    %140 = vmatprep.subr.bf16.mxu0 0
    %141 = vmatpush1.bf16.msra.mxu0 0
    %142 = vmatprep.subr.bf16.mxu0 0
    %143 = vmatpush1.bf16.msra.mxu0 0
    %144 = vmatprep.subr.bf16.mxu0 0
    %145 = vmatpush1.bf16.msra.mxu0 0
    %146 = vmatprep.subr.bf16.mxu0 0
    %147 = vmatpush1.bf16.msra.mxu0 %v138
    %148 = vmatprep.subr.bf16.mxu0 0
    %149 = vmatpush1.bf16.msra.mxu0 %v126
    %150 = vmatprep.subr.bf16.mxu0 0
    %151 = vmatpush1.bf16.msra.mxu0 %v125
    %152 = vmatprep.subr.bf16.mxu0 0
    %153 = vmatpush1.bf16.msra.mxu0 %v124
    %154 = vmatprep.subr.bf16.mxu0 0
    %155 = vmatpush1.bf16.msra.mxu0 %v123
    %156 = vmatprep.subr.bf16.mxu0 0
    %157 = vmatpush2.bf16.msra.mxu0 0
    %158 = vmatprep.subr.bf16.mxu0 0
    %159 = vmatpush2.bf16.msra.mxu0 0
    %160 = vmatprep.subr.bf16.mxu0 0
    %161 = vmatpush2.bf16.msra.mxu0 0
    %162 = vmatprep.subr.bf16.mxu0 0
    %163 = vmatpush2.bf16.msra.mxu0 0
    %164 = vmatprep.subr.bf16.mxu0 0
    %165 = vmatpush2.bf16.msra.mxu0 0
    %166 = vmatprep.subr.bf16.mxu0 0
    %167 = vmatpush2.bf16.msra.mxu0 0
    %168 = vmatprep.subr.bf16.mxu0 0
    %169 = vmatpush2.bf16.msra.mxu0 0
    %170 = vmatprep.subr.bf16.mxu0 0
    %171 = vmatpush2.bf16.msra.mxu0 0
    %172 = vmatprep.mubr.bf16.mxu0 0
    %173 = vmatmul.mubr.bf16.gmra.mxu0 %v134
    %v174 = vpop.f32.mrf.mxu0
    %v175 = vadd.f32 %v98, %v174
    %v176 = vpop.f32.mrf.mxu0
    %v177 = vpop.f32.mrf.mxu0
    %v178 = vadd.f32 %v98, %v177
    %v179 = vpop.f32.mrf.mxu0
    %180 = vdwg.mxu0
    %v181 = vmax.f32 %v175, 0.0
    %v182 = vmax.f32 %v178, 0.0
    %v183 = vpack.c.bf16 %v182, %v181
    %v184 = vld [vmem:[#allocation8] sm:$0xf]
    %v185 = vld [vmem:[#allocation8 + $0x4] sm:$0xf]
    %v186 = vld [vmem:[#allocation8 + $0x8] sm:$0xf]
    %v187 = vld [vmem:[#allocation8 + $0xc] sm:$0xf]
    %v188 = vld [vmem:[#allocation8 + $0x10] sm:$0xf]
    %v189 = vld [vmem:[#allocation8 + $0x14] sm:$0xf]
    %v190 = vld [vmem:[#allocation8 + $0x18] sm:$0xf]
    %v191 = vld [vmem:[#allocation8 + $0x1c] sm:$0xf]
    %v192 = vld [vmem:[#allocation8 + $0x20] sm:$0xf]
    %v193 = vld [vmem:[#allocation8 + $0x24] sm:$0xf]
    %v194 = vld [vmem:[#allocation8 + $0x28] sm:$0xf]
    %v195 = vld [vmem:[#allocation8 + $0x2c] sm:$0xf]
    %v196 = vld [vmem:[#allocation8 + $0x30] sm:$0xf]
    %v197 = vld [vmem:[#allocation8 + $0x34] sm:$0xf]
    %v198 = vld [vmem:[#allocation8 + $0x38] sm:$0xf]
    %v199 = vld [vmem:[#allocation8 + $0x3c] sm:$0xf]
    %v216 = vunpack.c.l.b16 %v184
    %v217 = vunpack.c.l.b16 %v185
    %v218 = vunpack.c.l.b16 %v186
    %v219 = vunpack.c.l.b16 %v187
    %v220 = vunpack.c.l.b16 %v188
    %v221 = vunpack.c.l.b16 %v189
    %v222 = vunpack.c.l.b16 %v190
    %v223 = vunpack.c.l.b16 %v191
    %v224 = vunpack.c.l.b16 %v192
    %v225 = vunpack.c.l.b16 %v193
    %v226 = vunpack.c.l.b16 %v194
    %v227 = vunpack.c.l.b16 %v195
    %v228 = vunpack.c.l.b16 %v196
    %v229 = vunpack.c.l.b16 %v197
    %v230 = vunpack.c.l.b16 %v198
    %v231 = vunpack.c.l.b16 %v199
    %v232 = vpack.c.b16 %v217, %v216
    %v233 = vpack.c.b16 %v219, %v218
    %v234 = vpack.c.b16 %v221, %v220
    %v235 = vpack.c.b16 %v223, %v222
    %v236 = vpack.c.b16 %v225, %v224
    %v237 = vpack.c.b16 %v227, %v226
    %v238 = vpack.c.b16 %v229, %v228
    %v239 = vpack.c.b16 %v231, %v230
    %248 = vmatprep.subr.bf16.mxu0 0
    %249 = vmatpush1.bf16.msra.mxu0 %v239
    %250 = vmatprep.subr.bf16.mxu0 0
    %251 = vmatpush1.bf16.msra.mxu0 %v238
    %252 = vmatprep.subr.bf16.mxu0 0
    %253 = vmatpush1.bf16.msra.mxu0 %v237
    %254 = vmatprep.subr.bf16.mxu0 0
    %255 = vmatpush1.bf16.msra.mxu0 %v236
    %256 = vmatprep.subr.bf16.mxu0 0
    %257 = vmatpush1.bf16.msra.mxu0 %v235
    %258 = vmatprep.subr.bf16.mxu0 0
    %259 = vmatpush1.bf16.msra.mxu0 %v234
    %260 = vmatprep.subr.bf16.mxu0 0
    %261 = vmatpush1.bf16.msra.mxu0 %v233
    %262 = vmatprep.subr.bf16.mxu0 0
    %263 = vmatpush1.bf16.msra.mxu0 %v232
    %264 = vmatprep.subr.bf16.mxu0 0
    %265 = vmatpush2.bf16.msra.mxu0 0
    %266 = vmatprep.subr.bf16.mxu0 0
    %267 = vmatpush2.bf16.msra.mxu0 0
    %268 = vmatprep.subr.bf16.mxu0 0
    %269 = vmatpush2.bf16.msra.mxu0 0
    %270 = vmatprep.subr.bf16.mxu0 0
    %271 = vmatpush2.bf16.msra.mxu0 0
    %272 = vmatprep.subr.bf16.mxu0 0
    %273 = vmatpush2.bf16.msra.mxu0 0
    %274 = vmatprep.subr.bf16.mxu0 0
    %275 = vmatpush2.bf16.msra.mxu0 0
    %276 = vmatprep.subr.bf16.mxu0 0
    %277 = vmatpush2.bf16.msra.mxu0 0
    %278 = vmatprep.subr.bf16.mxu0 0
    %279 = vmatpush2.bf16.msra.mxu0 0
    %280 = vmatprep.mubr.bf16.mxu0 0
    %281 = vmatmul.mubr.bf16.gmra.mxu0 %v183
    %v282 = vpop.f32.mrf.mxu0
    %v283 = vadd.f32 0.0, %v282
    %v284 = vpop.f32.mrf.mxu0
    %v285 = vpop.f32.mrf.mxu0
    %v286 = vadd.f32 0.0, %v285
    %v287 = vpop.f32.mrf.mxu0
    %288 = vdwg.mxu0
    %v289 = vadd.f32 %v82, %v283
    %v290 = vadd.f32 %v82, %v286
    %v291 = vld [vmem:[#allocation5 + $0x4] sm:$0xf]
    %v292 = vld [vmem:[#allocation5 + $0x1c] sm:$0xf]
    %v293 = vld [vmem:[#allocation5 + $0x34] sm:$0xf]
    %v294 = vld [vmem:[#allocation5 + $0x4c] sm:$0xf]
    %v295 = vld [vmem:[#allocation5 + $0x64] sm:$0xf]
    %v296 = vld [vmem:[#allocation5 + $0x7c] sm:$0xf]
    %v297 = vld [vmem:[#allocation5 + $0x94] sm:$0xf]
    %v298 = vld [vmem:[#allocation5 + $0xac] sm:$0xf]
    %v299 = vld [vmem:[#allocation5 + $0xc4] sm:$0xf]
    %v300 = vld [vmem:[#allocation7 + $0x1] sm:$0x1]
    %v302 = vlaneseq
    %v303 = vshrl.u32 %v302, 7
    %v304 = vsub.s32 0, %v303
    %v305 = vrot.slane %v300, %v304
    %v316 = vunpack.c.l.b16 %v291
    %v317 = vunpack.c.l.b16 %v292
    %v318 = vunpack.c.l.b16 %v293
    %v319 = vunpack.c.l.b16 %v294
    %v320 = vunpack.c.l.b16 %v295
    %v321 = vunpack.c.l.b16 %v296
    %v322 = vunpack.c.l.b16 %v297
    %v323 = vunpack.c.l.b16 %v298
    %v324 = vunpack.c.l.b16 %v299
    %v325 = vpack.c.b16 %v317, %v316
    %v326 = vpack.c.b16 %v319, %v318
    %v327 = vpack.c.b16 %v321, %v320
    %v328 = vpack.c.b16 %v323, %v322
    %v329 = vpack.c.b16 %v324, %v324
    %v335 = vsel %vm136, %v329, 0
    %337 = vmatprep.subr.bf16.mxu0 0
    %338 = vmatpush1.bf16.msra.mxu0 0
    %339 = vmatprep.subr.bf16.mxu0 0
    %340 = vmatpush1.bf16.msra.mxu0 0
    %341 = vmatprep.subr.bf16.mxu0 0
    %342 = vmatpush1.bf16.msra.mxu0 0
    %343 = vmatprep.subr.bf16.mxu0 0
    %344 = vmatpush1.bf16.msra.mxu0 %v335
    %345 = vmatprep.subr.bf16.mxu0 0
    %346 = vmatpush1.bf16.msra.mxu0 %v328
    %347 = vmatprep.subr.bf16.mxu0 0
    %348 = vmatpush1.bf16.msra.mxu0 %v327
    %349 = vmatprep.subr.bf16.mxu0 0
    %350 = vmatpush1.bf16.msra.mxu0 %v326
    %351 = vmatprep.subr.bf16.mxu0 0
    %352 = vmatpush1.bf16.msra.mxu0 %v325
    %353 = vmatprep.subr.bf16.mxu0 0
    %354 = vmatpush2.bf16.msra.mxu0 0
    %355 = vmatprep.subr.bf16.mxu0 0
    %356 = vmatpush2.bf16.msra.mxu0 0
    %357 = vmatprep.subr.bf16.mxu0 0
    %358 = vmatpush2.bf16.msra.mxu0 0
    %359 = vmatprep.subr.bf16.mxu0 0
    %360 = vmatpush2.bf16.msra.mxu0 0
    %361 = vmatprep.subr.bf16.mxu0 0
    %362 = vmatpush2.bf16.msra.mxu0 0
    %363 = vmatprep.subr.bf16.mxu0 0
    %364 = vmatpush2.bf16.msra.mxu0 0
    %365 = vmatprep.subr.bf16.mxu0 0
    %366 = vmatpush2.bf16.msra.mxu0 0
    %367 = vmatprep.subr.bf16.mxu0 0
    %368 = vmatpush2.bf16.msra.mxu0 0
    %369 = vmatprep.mubr.bf16.mxu0 0
    %370 = vmatmul.mubr.bf16.gmra.mxu0 %v134
    %v371 = vpop.f32.mrf.mxu0
    %v372 = vadd.f32 %v305, %v371
    %v373 = vpop.f32.mrf.mxu0
    %v374 = vpop.f32.mrf.mxu0
    %v375 = vadd.f32 %v305, %v374
    %v376 = vpop.f32.mrf.mxu0
    %377 = vdwg.mxu0
    %v378 = vmax.f32 %v372, 0.0
    %v379 = vmax.f32 %v375, 0.0
    %v380 = vpack.c.bf16 %v379, %v378
    %v381 = vld [vmem:[#allocation8 + $0x40] sm:$0xf]
    %v382 = vld [vmem:[#allocation8 + $0x44] sm:$0xf]
    %v383 = vld [vmem:[#allocation8 + $0x48] sm:$0xf]
    %v384 = vld [vmem:[#allocation8 + $0x4c] sm:$0xf]
    %v385 = vld [vmem:[#allocation8 + $0x50] sm:$0xf]
    %v386 = vld [vmem:[#allocation8 + $0x54] sm:$0xf]
    %v387 = vld [vmem:[#allocation8 + $0x58] sm:$0xf]
    %v388 = vld [vmem:[#allocation8 + $0x5c] sm:$0xf]
    %v389 = vld [vmem:[#allocation8 + $0x60] sm:$0xf]
    %v390 = vld [vmem:[#allocation8 + $0x64] sm:$0xf]
    %v391 = vld [vmem:[#allocation8 + $0x68] sm:$0xf]
    %v392 = vld [vmem:[#allocation8 + $0x6c] sm:$0xf]
    %v393 = vld [vmem:[#allocation8 + $0x70] sm:$0xf]
    %v394 = vld [vmem:[#allocation8 + $0x74] sm:$0xf]
    %v395 = vld [vmem:[#allocation8 + $0x78] sm:$0xf]
    %v396 = vld [vmem:[#allocation8 + $0x7c] sm:$0xf]
    %v413 = vunpack.c.l.b16 %v381
    %v414 = vunpack.c.l.b16 %v382
    %v415 = vunpack.c.l.b16 %v383
    %v416 = vunpack.c.l.b16 %v384
    %v417 = vunpack.c.l.b16 %v385
    %v418 = vunpack.c.l.b16 %v386
    %v419 = vunpack.c.l.b16 %v387
    %v420 = vunpack.c.l.b16 %v388
    %v421 = vunpack.c.l.b16 %v389
    %v422 = vunpack.c.l.b16 %v390
    %v423 = vunpack.c.l.b16 %v391
    %v424 = vunpack.c.l.b16 %v392
    %v425 = vunpack.c.l.b16 %v393
    %v426 = vunpack.c.l.b16 %v394
    %v427 = vunpack.c.l.b16 %v395
    %v428 = vunpack.c.l.b16 %v396
    %v429 = vpack.c.b16 %v414, %v413
    %v430 = vpack.c.b16 %v416, %v415
    %v431 = vpack.c.b16 %v418, %v417
    %v432 = vpack.c.b16 %v420, %v419
    %v433 = vpack.c.b16 %v422, %v421
    %v434 = vpack.c.b16 %v424, %v423
    %v435 = vpack.c.b16 %v426, %v425
    %v436 = vpack.c.b16 %v428, %v427
    %445 = vmatprep.subr.bf16.mxu0 0
    %446 = vmatpush1.bf16.msra.mxu0 %v436
    %447 = vmatprep.subr.bf16.mxu0 0
    %448 = vmatpush1.bf16.msra.mxu0 %v435
    %449 = vmatprep.subr.bf16.mxu0 0
    %450 = vmatpush1.bf16.msra.mxu0 %v434
    %451 = vmatprep.subr.bf16.mxu0 0
    %452 = vmatpush1.bf16.msra.mxu0 %v433
    %453 = vmatprep.subr.bf16.mxu0 0
    %454 = vmatpush1.bf16.msra.mxu0 %v432
    %455 = vmatprep.subr.bf16.mxu0 0
    %456 = vmatpush1.bf16.msra.mxu0 %v431
    %457 = vmatprep.subr.bf16.mxu0 0
    %458 = vmatpush1.bf16.msra.mxu0 %v430
    %459 = vmatprep.subr.bf16.mxu0 0
    %460 = vmatpush1.bf16.msra.mxu0 %v429
    %461 = vmatprep.subr.bf16.mxu0 0
    %462 = vmatpush2.bf16.msra.mxu0 0
    %463 = vmatprep.subr.bf16.mxu0 0
    %464 = vmatpush2.bf16.msra.mxu0 0
    %465 = vmatprep.subr.bf16.mxu0 0
    %466 = vmatpush2.bf16.msra.mxu0 0
    %467 = vmatprep.subr.bf16.mxu0 0
    %468 = vmatpush2.bf16.msra.mxu0 0
    %469 = vmatprep.subr.bf16.mxu0 0
    %470 = vmatpush2.bf16.msra.mxu0 0
    %471 = vmatprep.subr.bf16.mxu0 0
    %472 = vmatpush2.bf16.msra.mxu0 0
    %473 = vmatprep.subr.bf16.mxu0 0
    %474 = vmatpush2.bf16.msra.mxu0 0
    %475 = vmatprep.subr.bf16.mxu0 0
    %476 = vmatpush2.bf16.msra.mxu0 0
    %477 = vmatprep.mubr.bf16.mxu0 0
    %478 = vmatmul.mubr.bf16.gmra.mxu0 %v380
    %v479 = vpop.f32.mrf.mxu0
    %v480 = vadd.f32 0.0, %v479
    %v481 = vpop.f32.mrf.mxu0
    %v482 = vpop.f32.mrf.mxu0
    %v483 = vadd.f32 0.0, %v482
    %v484 = vpop.f32.mrf.mxu0
    %485 = vdwg.mxu0
    %v486 = vadd.f32 %v289, %v480
    %v487 = vadd.f32 %v290, %v483
    %v488 = vld [vmem:[#allocation5 + $0x8] sm:$0xf]
    %v489 = vld [vmem:[#allocation5 + $0x20] sm:$0xf]
    %v490 = vld [vmem:[#allocation5 + $0x38] sm:$0xf]
    %v491 = vld [vmem:[#allocation5 + $0x50] sm:$0xf]
    %v492 = vld [vmem:[#allocation5 + $0x68] sm:$0xf]
    %v493 = vld [vmem:[#allocation5 + $0x80] sm:$0xf]
    %v494 = vld [vmem:[#allocation5 + $0x98] sm:$0xf]
    %v495 = vld [vmem:[#allocation5 + $0xb0] sm:$0xf]
    %v496 = vld [vmem:[#allocation5 + $0xc8] sm:$0xf]
    %v497 = vld [vmem:[#allocation7 + $0x2] sm:$0x1]
    %v499 = vlaneseq
    %v500 = vshrl.u32 %v499, 7
    %v501 = vsub.s32 0, %v500
    %v502 = vrot.slane %v497, %v501
    %v513 = vunpack.c.l.b16 %v488
    %v514 = vunpack.c.l.b16 %v489
    %v515 = vunpack.c.l.b16 %v490
    %v516 = vunpack.c.l.b16 %v491
    %v517 = vunpack.c.l.b16 %v492
    %v518 = vunpack.c.l.b16 %v493
    %v519 = vunpack.c.l.b16 %v494
    %v520 = vunpack.c.l.b16 %v495
    %v521 = vunpack.c.l.b16 %v496
    %v522 = vpack.c.b16 %v514, %v513
    %v523 = vpack.c.b16 %v516, %v515
    %v524 = vpack.c.b16 %v518, %v517
    %v525 = vpack.c.b16 %v520, %v519
    %v526 = vpack.c.b16 %v521, %v521
    %v532 = vsel %vm136, %v526, 0
    %534 = vmatprep.subr.bf16.mxu0 0
    %535 = vmatpush1.bf16.msra.mxu0 0
    %536 = vmatprep.subr.bf16.mxu0 0
    %537 = vmatpush1.bf16.msra.mxu0 0
    %538 = vmatprep.subr.bf16.mxu0 0
    %539 = vmatpush1.bf16.msra.mxu0 0
    %540 = vmatprep.subr.bf16.mxu0 0
    %541 = vmatpush1.bf16.msra.mxu0 %v532
    %542 = vmatprep.subr.bf16.mxu0 0
    %543 = vmatpush1.bf16.msra.mxu0 %v525
    %544 = vmatprep.subr.bf16.mxu0 0
    %545 = vmatpush1.bf16.msra.mxu0 %v524
    %546 = vmatprep.subr.bf16.mxu0 0
    %547 = vmatpush1.bf16.msra.mxu0 %v523
    %548 = vmatprep.subr.bf16.mxu0 0
    %549 = vmatpush1.bf16.msra.mxu0 %v522
    %550 = vmatprep.subr.bf16.mxu0 0
    %551 = vmatpush2.bf16.msra.mxu0 0
    %552 = vmatprep.subr.bf16.mxu0 0
    %553 = vmatpush2.bf16.msra.mxu0 0
    %554 = vmatprep.subr.bf16.mxu0 0
    %555 = vmatpush2.bf16.msra.mxu0 0
    %556 = vmatprep.subr.bf16.mxu0 0
    %557 = vmatpush2.bf16.msra.mxu0 0
    %558 = vmatprep.subr.bf16.mxu0 0
    %559 = vmatpush2.bf16.msra.mxu0 0
    %560 = vmatprep.subr.bf16.mxu0 0
    %561 = vmatpush2.bf16.msra.mxu0 0
    %562 = vmatprep.subr.bf16.mxu0 0
    %563 = vmatpush2.bf16.msra.mxu0 0
    %564 = vmatprep.subr.bf16.mxu0 0
    %565 = vmatpush2.bf16.msra.mxu0 0
    %566 = vmatprep.mubr.bf16.mxu0 0
    %567 = vmatmul.mubr.bf16.gmra.mxu0 %v134
    %v568 = vpop.f32.mrf.mxu0
    %v569 = vadd.f32 %v502, %v568
    %v570 = vpop.f32.mrf.mxu0
    %v571 = vpop.f32.mrf.mxu0
    %v572 = vadd.f32 %v502, %v571
    %v573 = vpop.f32.mrf.mxu0
    %574 = vdwg.mxu0
    %v575 = vmax.f32 %v569, 0.0
    %v576 = vmax.f32 %v572, 0.0
    %v577 = vpack.c.bf16 %v576, %v575
    %v578 = vld [vmem:[#allocation8 + $0x80] sm:$0xf]
    %v579 = vld [vmem:[#allocation8 + $0x84] sm:$0xf]
    %v580 = vld [vmem:[#allocation8 + $0x88] sm:$0xf]
    %v581 = vld [vmem:[#allocation8 + $0x8c] sm:$0xf]
    %v582 = vld [vmem:[#allocation8 + $0x90] sm:$0xf]
    %v583 = vld [vmem:[#allocation8 + $0x94] sm:$0xf]
    %v584 = vld [vmem:[#allocation8 + $0x98] sm:$0xf]
    %v585 = vld [vmem:[#allocation8 + $0x9c] sm:$0xf]
    %v586 = vld [vmem:[#allocation8 + $0xa0] sm:$0xf]
    %v587 = vld [vmem:[#allocation8 + $0xa4] sm:$0xf]
    %v588 = vld [vmem:[#allocation8 + $0xa8] sm:$0xf]
    %v589 = vld [vmem:[#allocation8 + $0xac] sm:$0xf]
    %v590 = vld [vmem:[#allocation8 + $0xb0] sm:$0xf]
    %v591 = vld [vmem:[#allocation8 + $0xb4] sm:$0xf]
    %v592 = vld [vmem:[#allocation8 + $0xb8] sm:$0xf]
    %v593 = vld [vmem:[#allocation8 + $0xbc] sm:$0xf]
    %v610 = vunpack.c.l.b16 %v578
    %v611 = vunpack.c.l.b16 %v579
    %v612 = vunpack.c.l.b16 %v580
    %v613 = vunpack.c.l.b16 %v581
    %v614 = vunpack.c.l.b16 %v582
    %v615 = vunpack.c.l.b16 %v583
    %v616 = vunpack.c.l.b16 %v584
    %v617 = vunpack.c.l.b16 %v585
    %v618 = vunpack.c.l.b16 %v586
    %v619 = vunpack.c.l.b16 %v587
    %v620 = vunpack.c.l.b16 %v588
    %v621 = vunpack.c.l.b16 %v589
    %v622 = vunpack.c.l.b16 %v590
    %v623 = vunpack.c.l.b16 %v591
    %v624 = vunpack.c.l.b16 %v592
    %v625 = vunpack.c.l.b16 %v593
    %v626 = vpack.c.b16 %v611, %v610
    %v627 = vpack.c.b16 %v613, %v612
    %v628 = vpack.c.b16 %v615, %v614
    %v629 = vpack.c.b16 %v617, %v616
    %v630 = vpack.c.b16 %v619, %v618
    %v631 = vpack.c.b16 %v621, %v620
    %v632 = vpack.c.b16 %v623, %v622
    %v633 = vpack.c.b16 %v625, %v624
    %642 = vmatprep.subr.bf16.mxu0 0
    %643 = vmatpush1.bf16.msra.mxu0 %v633
    %644 = vmatprep.subr.bf16.mxu0 0
    %645 = vmatpush1.bf16.msra.mxu0 %v632
    %646 = vmatprep.subr.bf16.mxu0 0
    %647 = vmatpush1.bf16.msra.mxu0 %v631
    %648 = vmatprep.subr.bf16.mxu0 0
    %649 = vmatpush1.bf16.msra.mxu0 %v630
    %650 = vmatprep.subr.bf16.mxu0 0
    %651 = vmatpush1.bf16.msra.mxu0 %v629
    %652 = vmatprep.subr.bf16.mxu0 0
    %653 = vmatpush1.bf16.msra.mxu0 %v628
    %654 = vmatprep.subr.bf16.mxu0 0
    %655 = vmatpush1.bf16.msra.mxu0 %v627
    %656 = vmatprep.subr.bf16.mxu0 0
    %657 = vmatpush1.bf16.msra.mxu0 %v626
    %658 = vmatprep.subr.bf16.mxu0 0
    %659 = vmatpush2.bf16.msra.mxu0 0
    %660 = vmatprep.subr.bf16.mxu0 0
    %661 = vmatpush2.bf16.msra.mxu0 0
    %662 = vmatprep.subr.bf16.mxu0 0
    %663 = vmatpush2.bf16.msra.mxu0 0
    %664 = vmatprep.subr.bf16.mxu0 0
    %665 = vmatpush2.bf16.msra.mxu0 0
    %666 = vmatprep.subr.bf16.mxu0 0
    %667 = vmatpush2.bf16.msra.mxu0 0
    %668 = vmatprep.subr.bf16.mxu0 0
    %669 = vmatpush2.bf16.msra.mxu0 0
    %670 = vmatprep.subr.bf16.mxu0 0
    %671 = vmatpush2.bf16.msra.mxu0 0
    %672 = vmatprep.subr.bf16.mxu0 0
    %673 = vmatpush2.bf16.msra.mxu0 0
    %674 = vmatprep.mubr.bf16.mxu0 0
    %675 = vmatmul.mubr.bf16.gmra.mxu0 %v577
    %v676 = vpop.f32.mrf.mxu0
    %v677 = vadd.f32 0.0, %v676
    %v678 = vpop.f32.mrf.mxu0
    %v679 = vpop.f32.mrf.mxu0
    %v680 = vadd.f32 0.0, %v679
    %v681 = vpop.f32.mrf.mxu0
    %682 = vdwg.mxu0
    %v683 = vadd.f32 %v486, %v677
    %v684 = vadd.f32 %v487, %v680
    %v685 = vld [vmem:[#allocation5 + $0xc] sm:$0xf]
    %v686 = vld [vmem:[#allocation5 + $0x24] sm:$0xf]
    %v687 = vld [vmem:[#allocation5 + $0x3c] sm:$0xf]
    %v688 = vld [vmem:[#allocation5 + $0x54] sm:$0xf]
    %v689 = vld [vmem:[#allocation5 + $0x6c] sm:$0xf]
    %v690 = vld [vmem:[#allocation5 + $0x84] sm:$0xf]
    %v691 = vld [vmem:[#allocation5 + $0x9c] sm:$0xf]
    %v692 = vld [vmem:[#allocation5 + $0xb4] sm:$0xf]
    %v693 = vld [vmem:[#allocation5 + $0xcc] sm:$0xf]
    %v694 = vld [vmem:[#allocation7 + $0x3] sm:$0x1]
    %v696 = vlaneseq
    %v697 = vshrl.u32 %v696, 7
    %v698 = vsub.s32 0, %v697
    %v699 = vrot.slane %v694, %v698
    %v710 = vunpack.c.l.b16 %v685
    %v711 = vunpack.c.l.b16 %v686
    %v712 = vunpack.c.l.b16 %v687
    %v713 = vunpack.c.l.b16 %v688
    %v714 = vunpack.c.l.b16 %v689
    %v715 = vunpack.c.l.b16 %v690
    %v716 = vunpack.c.l.b16 %v691
    %v717 = vunpack.c.l.b16 %v692
    %v718 = vunpack.c.l.b16 %v693
    %v719 = vpack.c.b16 %v711, %v710
    %v720 = vpack.c.b16 %v713, %v712
    %v721 = vpack.c.b16 %v715, %v714
    %v722 = vpack.c.b16 %v717, %v716
    %v723 = vpack.c.b16 %v718, %v718
    %v729 = vsel %vm136, %v723, 0
    %731 = vmatprep.subr.bf16.mxu0 0
    %732 = vmatpush1.bf16.msra.mxu0 0
    %733 = vmatprep.subr.bf16.mxu0 0
    %734 = vmatpush1.bf16.msra.mxu0 0
    %735 = vmatprep.subr.bf16.mxu0 0
    %736 = vmatpush1.bf16.msra.mxu0 0
    %737 = vmatprep.subr.bf16.mxu0 0
    %738 = vmatpush1.bf16.msra.mxu0 %v729
    %739 = vmatprep.subr.bf16.mxu0 0
    %740 = vmatpush1.bf16.msra.mxu0 %v722
    %741 = vmatprep.subr.bf16.mxu0 0
    %742 = vmatpush1.bf16.msra.mxu0 %v721
    %743 = vmatprep.subr.bf16.mxu0 0
    %744 = vmatpush1.bf16.msra.mxu0 %v720
    %745 = vmatprep.subr.bf16.mxu0 0
    %746 = vmatpush1.bf16.msra.mxu0 %v719
    %747 = vmatprep.subr.bf16.mxu0 0
    %748 = vmatpush2.bf16.msra.mxu0 0
    %749 = vmatprep.subr.bf16.mxu0 0
    %750 = vmatpush2.bf16.msra.mxu0 0
    %751 = vmatprep.subr.bf16.mxu0 0
    %752 = vmatpush2.bf16.msra.mxu0 0
    %753 = vmatprep.subr.bf16.mxu0 0
    %754 = vmatpush2.bf16.msra.mxu0 0
    %755 = vmatprep.subr.bf16.mxu0 0
    %756 = vmatpush2.bf16.msra.mxu0 0
    %757 = vmatprep.subr.bf16.mxu0 0
    %758 = vmatpush2.bf16.msra.mxu0 0
    %759 = vmatprep.subr.bf16.mxu0 0
    %760 = vmatpush2.bf16.msra.mxu0 0
    %761 = vmatprep.subr.bf16.mxu0 0
    %762 = vmatpush2.bf16.msra.mxu0 0
    %763 = vmatprep.mubr.bf16.mxu0 0
    %764 = vmatmul.mubr.bf16.gmra.mxu0 %v134
    %v765 = vpop.f32.mrf.mxu0
    %v766 = vadd.f32 %v699, %v765
    %v767 = vpop.f32.mrf.mxu0
    %v768 = vpop.f32.mrf.mxu0
    %v769 = vadd.f32 %v699, %v768
    %v770 = vpop.f32.mrf.mxu0
    %771 = vdwg.mxu0
    %v772 = vmax.f32 %v766, 0.0
    %v773 = vmax.f32 %v769, 0.0
    %v774 = vpack.c.bf16 %v773, %v772
    %v775 = vld [vmem:[#allocation8 + $0xc0] sm:$0xf]
    %v776 = vld [vmem:[#allocation8 + $0xc4] sm:$0xf]
    %v777 = vld [vmem:[#allocation8 + $0xc8] sm:$0xf]
    %v778 = vld [vmem:[#allocation8 + $0xcc] sm:$0xf]
    %v779 = vld [vmem:[#allocation8 + $0xd0] sm:$0xf]
    %v780 = vld [vmem:[#allocation8 + $0xd4] sm:$0xf]
    %v781 = vld [vmem:[#allocation8 + $0xd8] sm:$0xf]
    %v782 = vld [vmem:[#allocation8 + $0xdc] sm:$0xf]
    %v783 = vld [vmem:[#allocation8 + $0xe0] sm:$0xf]
    %v784 = vld [vmem:[#allocation8 + $0xe4] sm:$0xf]
    %v785 = vld [vmem:[#allocation8 + $0xe8] sm:$0xf]
    %v786 = vld [vmem:[#allocation8 + $0xec] sm:$0xf]
    %v787 = vld [vmem:[#allocation8 + $0xf0] sm:$0xf]
    %v788 = vld [vmem:[#allocation8 + $0xf4] sm:$0xf]
    %v789 = vld [vmem:[#allocation8 + $0xf8] sm:$0xf]
    %v790 = vld [vmem:[#allocation8 + $0xfc] sm:$0xf]
    %v807 = vunpack.c.l.b16 %v775
    %v808 = vunpack.c.l.b16 %v776
    %v809 = vunpack.c.l.b16 %v777
    %v810 = vunpack.c.l.b16 %v778
    %v811 = vunpack.c.l.b16 %v779
    %v812 = vunpack.c.l.b16 %v780
    %v813 = vunpack.c.l.b16 %v781
    %v814 = vunpack.c.l.b16 %v782
    %v815 = vunpack.c.l.b16 %v783
    %v816 = vunpack.c.l.b16 %v784
    %v817 = vunpack.c.l.b16 %v785
    %v818 = vunpack.c.l.b16 %v786
    %v819 = vunpack.c.l.b16 %v787
    %v820 = vunpack.c.l.b16 %v788
    %v821 = vunpack.c.l.b16 %v789
    %v822 = vunpack.c.l.b16 %v790
    %v823 = vpack.c.b16 %v808, %v807
    %v824 = vpack.c.b16 %v810, %v809
    %v825 = vpack.c.b16 %v812, %v811
    %v826 = vpack.c.b16 %v814, %v813
    %v827 = vpack.c.b16 %v816, %v815
    %v828 = vpack.c.b16 %v818, %v817
    %v829 = vpack.c.b16 %v820, %v819
    %v830 = vpack.c.b16 %v822, %v821
    %839 = vmatprep.subr.bf16.mxu0 0
    %840 = vmatpush1.bf16.msra.mxu0 %v830
    %841 = vmatprep.subr.bf16.mxu0 0
    %842 = vmatpush1.bf16.msra.mxu0 %v829
    %843 = vmatprep.subr.bf16.mxu0 0
    %844 = vmatpush1.bf16.msra.mxu0 %v828
    %845 = vmatprep.subr.bf16.mxu0 0
    %846 = vmatpush1.bf16.msra.mxu0 %v827
    %847 = vmatprep.subr.bf16.mxu0 0
    %848 = vmatpush1.bf16.msra.mxu0 %v826
    %849 = vmatprep.subr.bf16.mxu0 0
    %850 = vmatpush1.bf16.msra.mxu0 %v825
    %851 = vmatprep.subr.bf16.mxu0 0
    %852 = vmatpush1.bf16.msra.mxu0 %v824
    %853 = vmatprep.subr.bf16.mxu0 0
    %854 = vmatpush1.bf16.msra.mxu0 %v823
    %855 = vmatprep.subr.bf16.mxu0 0
    %856 = vmatpush2.bf16.msra.mxu0 0
    %857 = vmatprep.subr.bf16.mxu0 0
    %858 = vmatpush2.bf16.msra.mxu0 0
    %859 = vmatprep.subr.bf16.mxu0 0
    %860 = vmatpush2.bf16.msra.mxu0 0
    %861 = vmatprep.subr.bf16.mxu0 0
    %862 = vmatpush2.bf16.msra.mxu0 0
    %863 = vmatprep.subr.bf16.mxu0 0
    %864 = vmatpush2.bf16.msra.mxu0 0
    %865 = vmatprep.subr.bf16.mxu0 0
    %866 = vmatpush2.bf16.msra.mxu0 0
    %867 = vmatprep.subr.bf16.mxu0 0
    %868 = vmatpush2.bf16.msra.mxu0 0
    %869 = vmatprep.subr.bf16.mxu0 0
    %870 = vmatpush2.bf16.msra.mxu0 0
    %871 = vmatprep.mubr.bf16.mxu0 0
    %872 = vmatmul.mubr.bf16.gmra.mxu0 %v774
    %v873 = vpop.f32.mrf.mxu0
    %v874 = vadd.f32 0.0, %v873
    %v875 = vpop.f32.mrf.mxu0
    %v876 = vpop.f32.mrf.mxu0
    %v877 = vadd.f32 0.0, %v876
    %v878 = vpop.f32.mrf.mxu0
    %879 = vdwg.mxu0
    %v880 = vadd.f32 %v683, %v874
    %v881 = vadd.f32 %v684, %v877
    %v882 = vld [vmem:[#allocation5 + $0x10] sm:$0xf]
    %v883 = vld [vmem:[#allocation5 + $0x28] sm:$0xf]
    %v884 = vld [vmem:[#allocation5 + $0x40] sm:$0xf]
    %v885 = vld [vmem:[#allocation5 + $0x58] sm:$0xf]
    %v886 = vld [vmem:[#allocation5 + $0x70] sm:$0xf]
    %v887 = vld [vmem:[#allocation5 + $0x88] sm:$0xf]
    %v888 = vld [vmem:[#allocation5 + $0xa0] sm:$0xf]
    %v889 = vld [vmem:[#allocation5 + $0xb8] sm:$0xf]
    %v890 = vld [vmem:[#allocation5 + $0xd0] sm:$0xf]
    %v891 = vld [vmem:[#allocation7 + $0x4] sm:$0x1]
    %v893 = vlaneseq
    %v894 = vshrl.u32 %v893, 7
    %v895 = vsub.s32 0, %v894
    %v896 = vrot.slane %v891, %v895
    %v907 = vunpack.c.l.b16 %v882
    %v908 = vunpack.c.l.b16 %v883
    %v909 = vunpack.c.l.b16 %v884
    %v910 = vunpack.c.l.b16 %v885
    %v911 = vunpack.c.l.b16 %v886
    %v912 = vunpack.c.l.b16 %v887
    %v913 = vunpack.c.l.b16 %v888
    %v914 = vunpack.c.l.b16 %v889
    %v915 = vunpack.c.l.b16 %v890
    %v916 = vpack.c.b16 %v908, %v907
    %v917 = vpack.c.b16 %v910, %v909
    %v918 = vpack.c.b16 %v912, %v911
    %v919 = vpack.c.b16 %v914, %v913
    %v920 = vpack.c.b16 %v915, %v915
    %v926 = vsel %vm136, %v920, 0
    %928 = vmatprep.subr.bf16.mxu0 0
    %929 = vmatpush1.bf16.msra.mxu0 0
    %930 = vmatprep.subr.bf16.mxu0 0
    %931 = vmatpush1.bf16.msra.mxu0 0
    %932 = vmatprep.subr.bf16.mxu0 0
    %933 = vmatpush1.bf16.msra.mxu0 0
    %934 = vmatprep.subr.bf16.mxu0 0
    %935 = vmatpush1.bf16.msra.mxu0 %v926
    %936 = vmatprep.subr.bf16.mxu0 0
    %937 = vmatpush1.bf16.msra.mxu0 %v919
    %938 = vmatprep.subr.bf16.mxu0 0
    %939 = vmatpush1.bf16.msra.mxu0 %v918
    %940 = vmatprep.subr.bf16.mxu0 0
    %941 = vmatpush1.bf16.msra.mxu0 %v917
    %942 = vmatprep.subr.bf16.mxu0 0
    %943 = vmatpush1.bf16.msra.mxu0 %v916
    %944 = vmatprep.subr.bf16.mxu0 0
    %945 = vmatpush2.bf16.msra.mxu0 0
    %946 = vmatprep.subr.bf16.mxu0 0
    %947 = vmatpush2.bf16.msra.mxu0 0
    %948 = vmatprep.subr.bf16.mxu0 0
    %949 = vmatpush2.bf16.msra.mxu0 0
    %950 = vmatprep.subr.bf16.mxu0 0
    %951 = vmatpush2.bf16.msra.mxu0 0
    %952 = vmatprep.subr.bf16.mxu0 0
    %953 = vmatpush2.bf16.msra.mxu0 0
    %954 = vmatprep.subr.bf16.mxu0 0
    %955 = vmatpush2.bf16.msra.mxu0 0
    %956 = vmatprep.subr.bf16.mxu0 0
    %957 = vmatpush2.bf16.msra.mxu0 0
    %958 = vmatprep.subr.bf16.mxu0 0
    %959 = vmatpush2.bf16.msra.mxu0 0
    %960 = vmatprep.mubr.bf16.mxu0 0
    %961 = vmatmul.mubr.bf16.gmra.mxu0 %v134
    %v962 = vpop.f32.mrf.mxu0
    %v963 = vadd.f32 %v896, %v962
    %v964 = vpop.f32.mrf.mxu0
    %v965 = vpop.f32.mrf.mxu0
    %v966 = vadd.f32 %v896, %v965
    %v967 = vpop.f32.mrf.mxu0
    %968 = vdwg.mxu0
    %v969 = vmax.f32 %v963, 0.0
    %v970 = vmax.f32 %v966, 0.0
    %v971 = vpack.c.bf16 %v970, %v969
    %v972 = vld [vmem:[#allocation8 + $0x100] sm:$0xf]
    %v973 = vld [vmem:[#allocation8 + $0x104] sm:$0xf]
    %v974 = vld [vmem:[#allocation8 + $0x108] sm:$0xf]
    %v975 = vld [vmem:[#allocation8 + $0x10c] sm:$0xf]
    %v976 = vld [vmem:[#allocation8 + $0x110] sm:$0xf]
    %v977 = vld [vmem:[#allocation8 + $0x114] sm:$0xf]
    %v978 = vld [vmem:[#allocation8 + $0x118] sm:$0xf]
    %v979 = vld [vmem:[#allocation8 + $0x11c] sm:$0xf]
    %v980 = vld [vmem:[#allocation8 + $0x120] sm:$0xf]
    %v981 = vld [vmem:[#allocation8 + $0x124] sm:$0xf]
    %v982 = vld [vmem:[#allocation8 + $0x128] sm:$0xf]
    %v983 = vld [vmem:[#allocation8 + $0x12c] sm:$0xf]
    %v984 = vld [vmem:[#allocation8 + $0x130] sm:$0xf]
    %v985 = vld [vmem:[#allocation8 + $0x134] sm:$0xf]
    %v986 = vld [vmem:[#allocation8 + $0x138] sm:$0xf]
    %v987 = vld [vmem:[#allocation8 + $0x13c] sm:$0xf]
    %v1004 = vunpack.c.l.b16 %v972
    %v1005 = vunpack.c.l.b16 %v973
    %v1006 = vunpack.c.l.b16 %v974
    %v1007 = vunpack.c.l.b16 %v975
    %v1008 = vunpack.c.l.b16 %v976
    %v1009 = vunpack.c.l.b16 %v977
    %v1010 = vunpack.c.l.b16 %v978
    %v1011 = vunpack.c.l.b16 %v979
    %v1012 = vunpack.c.l.b16 %v980
    %v1013 = vunpack.c.l.b16 %v981
    %v1014 = vunpack.c.l.b16 %v982
    %v1015 = vunpack.c.l.b16 %v983
    %v1016 = vunpack.c.l.b16 %v984
    %v1017 = vunpack.c.l.b16 %v985
    %v1018 = vunpack.c.l.b16 %v986
    %v1019 = vunpack.c.l.b16 %v987
    %v1020 = vpack.c.b16 %v1005, %v1004
    %v1021 = vpack.c.b16 %v1007, %v1006
    %v1022 = vpack.c.b16 %v1009, %v1008
    %v1023 = vpack.c.b16 %v1011, %v1010
    %v1024 = vpack.c.b16 %v1013, %v1012
    %v1025 = vpack.c.b16 %v1015, %v1014
    %v1026 = vpack.c.b16 %v1017, %v1016
    %v1027 = vpack.c.b16 %v1019, %v1018
    %1036 = vmatprep.subr.bf16.mxu0 0
    %1037 = vmatpush1.bf16.msra.mxu0 %v1027
    %1038 = vmatprep.subr.bf16.mxu0 0
    %1039 = vmatpush1.bf16.msra.mxu0 %v1026
    %1040 = vmatprep.subr.bf16.mxu0 0
    %1041 = vmatpush1.bf16.msra.mxu0 %v1025
    %1042 = vmatprep.subr.bf16.mxu0 0
    %1043 = vmatpush1.bf16.msra.mxu0 %v1024
    %1044 = vmatprep.subr.bf16.mxu0 0
    %1045 = vmatpush1.bf16.msra.mxu0 %v1023
    %1046 = vmatprep.subr.bf16.mxu0 0
    %1047 = vmatpush1.bf16.msra.mxu0 %v1022
    %1048 = vmatprep.subr.bf16.mxu0 0
    %1049 = vmatpush1.bf16.msra.mxu0 %v1021
    %1050 = vmatprep.subr.bf16.mxu0 0
    %1051 = vmatpush1.bf16.msra.mxu0 %v1020
    %1052 = vmatprep.subr.bf16.mxu0 0
    %1053 = vmatpush2.bf16.msra.mxu0 0
    %1054 = vmatprep.subr.bf16.mxu0 0
    %1055 = vmatpush2.bf16.msra.mxu0 0
    %1056 = vmatprep.subr.bf16.mxu0 0
    %1057 = vmatpush2.bf16.msra.mxu0 0
    %1058 = vmatprep.subr.bf16.mxu0 0
    %1059 = vmatpush2.bf16.msra.mxu0 0
    %1060 = vmatprep.subr.bf16.mxu0 0
    %1061 = vmatpush2.bf16.msra.mxu0 0
    %1062 = vmatprep.subr.bf16.mxu0 0
    %1063 = vmatpush2.bf16.msra.mxu0 0
    %1064 = vmatprep.subr.bf16.mxu0 0
    %1065 = vmatpush2.bf16.msra.mxu0 0
    %1066 = vmatprep.subr.bf16.mxu0 0
    %1067 = vmatpush2.bf16.msra.mxu0 0
    %1068 = vmatprep.mubr.bf16.mxu0 0
    %1069 = vmatmul.mubr.bf16.gmra.mxu0 %v971
    %v1070 = vpop.f32.mrf.mxu0
    %v1071 = vadd.f32 0.0, %v1070
    %v1072 = vpop.f32.mrf.mxu0
    %v1073 = vpop.f32.mrf.mxu0
    %v1074 = vadd.f32 0.0, %v1073
    %v1075 = vpop.f32.mrf.mxu0
    %1076 = vdwg.mxu0
    %v1077 = vadd.f32 %v880, %v1071
    %v1078 = vadd.f32 %v881, %v1074
    %v1079 = vld [vmem:[#allocation5 + $0x14] sm:$0xf]
    %v1080 = vld [vmem:[#allocation5 + $0x2c] sm:$0xf]
    %v1081 = vld [vmem:[#allocation5 + $0x44] sm:$0xf]
    %v1082 = vld [vmem:[#allocation5 + $0x5c] sm:$0xf]
    %v1083 = vld [vmem:[#allocation5 + $0x74] sm:$0xf]
    %v1084 = vld [vmem:[#allocation5 + $0x8c] sm:$0xf]
    %v1085 = vld [vmem:[#allocation5 + $0xa4] sm:$0xf]
    %v1086 = vld [vmem:[#allocation5 + $0xbc] sm:$0xf]
    %v1087 = vld [vmem:[#allocation5 + $0xd4] sm:$0xf]
    %v1088 = vld [vmem:[#allocation7 + $0x5] sm:$0x1]
    %v1090 = vlaneseq
    %v1091 = vshrl.u32 %v1090, 7
    %v1092 = vsub.s32 0, %v1091
    %v1093 = vrot.slane %v1088, %v1092
    %v1104 = vunpack.c.l.b16 %v1079
    %v1105 = vunpack.c.l.b16 %v1080
    %v1106 = vunpack.c.l.b16 %v1081
    %v1107 = vunpack.c.l.b16 %v1082
    %v1108 = vunpack.c.l.b16 %v1083
    %v1109 = vunpack.c.l.b16 %v1084
    %v1110 = vunpack.c.l.b16 %v1085
    %v1111 = vunpack.c.l.b16 %v1086
    %v1112 = vunpack.c.l.b16 %v1087
    %v1113 = vpack.c.b16 %v1105, %v1104
    %v1114 = vpack.c.b16 %v1107, %v1106
    %v1115 = vpack.c.b16 %v1109, %v1108
    %v1116 = vpack.c.b16 %v1111, %v1110
    %v1117 = vpack.c.b16 %v1112, %v1112
    %v1123 = vsel %vm136, %v1117, 0
    %1125 = vmatprep.subr.bf16.mxu0 0
    %1126 = vmatpush1.bf16.msra.mxu0 0
    %1127 = vmatprep.subr.bf16.mxu0 0
    %1128 = vmatpush1.bf16.msra.mxu0 0
    %1129 = vmatprep.subr.bf16.mxu0 0
    %1130 = vmatpush1.bf16.msra.mxu0 0
    %1131 = vmatprep.subr.bf16.mxu0 0
    %1132 = vmatpush1.bf16.msra.mxu0 %v1123
    %1133 = vmatprep.subr.bf16.mxu0 0
    %1134 = vmatpush1.bf16.msra.mxu0 %v1116
    %1135 = vmatprep.subr.bf16.mxu0 0
    %1136 = vmatpush1.bf16.msra.mxu0 %v1115
    %1137 = vmatprep.subr.bf16.mxu0 0
    %1138 = vmatpush1.bf16.msra.mxu0 %v1114
    %1139 = vmatprep.subr.bf16.mxu0 0
    %1140 = vmatpush1.bf16.msra.mxu0 %v1113
    %1141 = vmatprep.subr.bf16.mxu0 0
    %1142 = vmatpush2.bf16.msra.mxu0 0
    %1143 = vmatprep.subr.bf16.mxu0 0
    %1144 = vmatpush2.bf16.msra.mxu0 0
    %1145 = vmatprep.subr.bf16.mxu0 0
    %1146 = vmatpush2.bf16.msra.mxu0 0
    %1147 = vmatprep.subr.bf16.mxu0 0
    %1148 = vmatpush2.bf16.msra.mxu0 0
    %1149 = vmatprep.subr.bf16.mxu0 0
    %1150 = vmatpush2.bf16.msra.mxu0 0
    %1151 = vmatprep.subr.bf16.mxu0 0
    %1152 = vmatpush2.bf16.msra.mxu0 0
    %1153 = vmatprep.subr.bf16.mxu0 0
    %1154 = vmatpush2.bf16.msra.mxu0 0
    %1155 = vmatprep.subr.bf16.mxu0 0
    %1156 = vmatpush2.bf16.msra.mxu0 0
    %1157 = vmatprep.mubr.bf16.mxu0 0
    %1158 = vmatmul.mubr.bf16.gmra.mxu0 %v134
    %v1159 = vpop.f32.mrf.mxu0
    %v1160 = vadd.f32 %v1093, %v1159
    %v1161 = vpop.f32.mrf.mxu0
    %v1162 = vpop.f32.mrf.mxu0
    %v1163 = vadd.f32 %v1093, %v1162
    %v1164 = vpop.f32.mrf.mxu0
    %1165 = vdwg.mxu0
    %v1166 = vmax.f32 %v1160, 0.0
    %v1167 = vmax.f32 %v1163, 0.0
    %v1168 = vpack.c.bf16 %v1167, %v1166
    %v1169 = vld [vmem:[#allocation8 + $0x140] sm:$0xf]
    %v1170 = vld [vmem:[#allocation8 + $0x144] sm:$0xf]
    %v1171 = vld [vmem:[#allocation8 + $0x148] sm:$0xf]
    %v1172 = vld [vmem:[#allocation8 + $0x14c] sm:$0xf]
    %v1173 = vld [vmem:[#allocation8 + $0x150] sm:$0xf]
    %v1174 = vld [vmem:[#allocation8 + $0x154] sm:$0xf]
    %v1175 = vld [vmem:[#allocation8 + $0x158] sm:$0xf]
    %v1176 = vld [vmem:[#allocation8 + $0x15c] sm:$0xf]
    %v1177 = vld [vmem:[#allocation8 + $0x160] sm:$0xf]
    %v1178 = vld [vmem:[#allocation8 + $0x164] sm:$0xf]
    %v1179 = vld [vmem:[#allocation8 + $0x168] sm:$0xf]
    %v1180 = vld [vmem:[#allocation8 + $0x16c] sm:$0xf]
    %v1181 = vld [vmem:[#allocation8 + $0x170] sm:$0xf]
    %v1182 = vld [vmem:[#allocation8 + $0x174] sm:$0xf]
    %v1183 = vld [vmem:[#allocation8 + $0x178] sm:$0xf]
    %v1184 = vld [vmem:[#allocation8 + $0x17c] sm:$0xf]
    %v1201 = vunpack.c.l.b16 %v1169
    %v1202 = vunpack.c.l.b16 %v1170
    %v1203 = vunpack.c.l.b16 %v1171
    %v1204 = vunpack.c.l.b16 %v1172
    %v1205 = vunpack.c.l.b16 %v1173
    %v1206 = vunpack.c.l.b16 %v1174
    %v1207 = vunpack.c.l.b16 %v1175
    %v1208 = vunpack.c.l.b16 %v1176
    %v1209 = vunpack.c.l.b16 %v1177
    %v1210 = vunpack.c.l.b16 %v1178
    %v1211 = vunpack.c.l.b16 %v1179
    %v1212 = vunpack.c.l.b16 %v1180
    %v1213 = vunpack.c.l.b16 %v1181
    %v1214 = vunpack.c.l.b16 %v1182
    %v1215 = vunpack.c.l.b16 %v1183
    %v1216 = vunpack.c.l.b16 %v1184
    %v1217 = vpack.c.b16 %v1202, %v1201
    %v1218 = vpack.c.b16 %v1204, %v1203
    %v1219 = vpack.c.b16 %v1206, %v1205
    %v1220 = vpack.c.b16 %v1208, %v1207
    %v1221 = vpack.c.b16 %v1210, %v1209
    %v1222 = vpack.c.b16 %v1212, %v1211
    %v1223 = vpack.c.b16 %v1214, %v1213
    %v1224 = vpack.c.b16 %v1216, %v1215
    %1233 = vmatprep.subr.bf16.mxu0 0
    %1234 = vmatpush1.bf16.msra.mxu0 %v1224
    %1235 = vmatprep.subr.bf16.mxu0 0
    %1236 = vmatpush1.bf16.msra.mxu0 %v1223
    %1237 = vmatprep.subr.bf16.mxu0 0
    %1238 = vmatpush1.bf16.msra.mxu0 %v1222
    %1239 = vmatprep.subr.bf16.mxu0 0
    %1240 = vmatpush1.bf16.msra.mxu0 %v1221
    %1241 = vmatprep.subr.bf16.mxu0 0
    %1242 = vmatpush1.bf16.msra.mxu0 %v1220
    %1243 = vmatprep.subr.bf16.mxu0 0
    %1244 = vmatpush1.bf16.msra.mxu0 %v1219
    %1245 = vmatprep.subr.bf16.mxu0 0
    %1246 = vmatpush1.bf16.msra.mxu0 %v1218
    %1247 = vmatprep.subr.bf16.mxu0 0
    %1248 = vmatpush1.bf16.msra.mxu0 %v1217
    %1249 = vmatprep.subr.bf16.mxu0 0
    %1250 = vmatpush2.bf16.msra.mxu0 0
    %1251 = vmatprep.subr.bf16.mxu0 0
    %1252 = vmatpush2.bf16.msra.mxu0 0
    %1253 = vmatprep.subr.bf16.mxu0 0
    %1254 = vmatpush2.bf16.msra.mxu0 0
    %1255 = vmatprep.subr.bf16.mxu0 0
    %1256 = vmatpush2.bf16.msra.mxu0 0
    %1257 = vmatprep.subr.bf16.mxu0 0
    %1258 = vmatpush2.bf16.msra.mxu0 0
    %1259 = vmatprep.subr.bf16.mxu0 0
    %1260 = vmatpush2.bf16.msra.mxu0 0
    %1261 = vmatprep.subr.bf16.mxu0 0
    %1262 = vmatpush2.bf16.msra.mxu0 0
    %1263 = vmatprep.subr.bf16.mxu0 0
    %1264 = vmatpush2.bf16.msra.mxu0 0
    %1265 = vmatprep.mubr.bf16.mxu0 0
    %1266 = vmatmul.mubr.bf16.gmra.mxu0 %v1168
    %v1267 = vpop.f32.mrf.mxu0
    %v1268 = vadd.f32 0.0, %v1267
    %v1269 = vpop.f32.mrf.mxu0
    %v1270 = vpop.f32.mrf.mxu0
    %v1271 = vadd.f32 0.0, %v1270
    %v1272 = vpop.f32.mrf.mxu0
    %1273 = vdwg.mxu0
    %v1274 = vadd.f32 %v1077, %v1268
    %v1275 = vadd.f32 %v1078, %v1271
    %1276 = vst [vmem:[#allocation10] sm:$0xff] %v1274
    %1277 = vst [vmem:[#allocation10 + $0x8] sm:$0xff] %v1275
    // Predicated region
    $region38: #{tpu_custom_call.1} parent=1 // pred_check
      _
    $region39: #{tpu_custom_call.1} parent=1 // pred_check_branch
      %1279 = sbr.rel (0) target = $region41
    $region40: #{tpu_custom_call.1} parent=1 // pred_region
      %s1281 = ssub.s32 256, 256
      %1282 = vsyncadd [#allocation4], %s1281
      %s1283 = sshll.u32 [#allocation10], 4
      %s1284 = int_to_ptr.vmem [resolvable:$true] %s1283
      %1289 = dma.vmem_to_hbm [thread:$0]  %s1284, 256, %s5, [#allocation4], 128, 128, 8
    $region41: #{tpu_custom_call.1} parent=1 // pred_fallthru
      _
    // Predicated region
    $region42: #{tpu_custom_call.1} parent=1 // pred_check
      _
    $region43: #{tpu_custom_call.1} parent=1 // pred_check_branch
      %1291 = sbr.rel (0) target = $region45
    $region44: #{tpu_custom_call.1} parent=1 // pred_region
      %1292 = dma.done [#allocation4], 256
    $region45: #{tpu_custom_call.1} parent=1 // pred_fallthru
      _
    %1293 = vsyncpa [#allocation3], 1
    %1294 = vsyncpa [#allocation6], 1
    %1295 = vsyncpa [#allocation9], 1
    %1296 = vsyncpa [#allocation4], 1

</llo_original>
